<compile_context>
chip_gen: v7x
topology: tpu7x:2x2x1
jax: 0.10.0
libtpu: 0.0.40
codegen_flags: <defaults>
</compile_context>

<pallas_src>
import jax
import jax.numpy as jnp
from jax.experimental import pallas as pl
from jax.experimental.pallas import tpu as pltpu

# Logical (PyTorch) dims and lane-aligned padded dims.
D_IN, H1, H2, D_OUT = 512, 200, 100, 2
H1P, H2P, OUTP = 256, 128, 128


def _round_up(n, m):
    return (n + m - 1) // m * m


def _cdiv(a, b):
    return (a + b - 1) // b


def mlp_kernel(x_ref, w1_ref, b1_ref, w2_ref, b2_ref, w3_ref, b3_ref, o_ref):
    # Input arrives f32 from HBM; cast to bf16 in-kernel (cheap VPU work,
    # hidden under the input DMA) so the MXU runs its native bf16 path.
    x = x_ref[...].astype(jnp.bfloat16)                          # (tb, 512)

    # Layer 1: Linear(512, 256pad) + ReLU  (padded cols have zero W / zero b)
    h1 = jnp.dot(x, w1_ref[...], preferred_element_type=jnp.float32)
    h1 = jnp.maximum(h1 + b1_ref[...], 0.0)                      # (tb, 256) f32

    # Layer 2: Linear(256pad, 128pad) + ReLU
    h2 = jnp.dot(h1.astype(jnp.bfloat16), w2_ref[...],
                 preferred_element_type=jnp.float32)
    h2 = jnp.maximum(h2 + b2_ref[...], 0.0)                      # (tb, 128) f32

    # Layer 3: Linear(128pad, 128pad); store only the 2 real logit columns.
    h3 = jnp.dot(h2.astype(jnp.bfloat16), w3_ref[...],
                 preferred_element_type=jnp.float32)             # (tb, 128) f32
    o_ref[...] = (h3[:, :D_OUT] + b3_ref[...]).astype(o_ref.dtype)   # (tb, 2)


def init_params(key):
    """Logical f32 params, PyTorch-Linear-like init. Weights stored (in, out)."""
    dims = [(D_IN, H1), (H1, H2), (H2, D_OUT)]
    params = {}
    for i, (d_in, d_out) in enumerate(dims, start=1):
        key, kw, kb = jax.random.split(key, 3)
        bound = 1.0 / (d_in ** 0.5)
        params[f"w{i}"] = jax.random.uniform(
            kw, (d_in, d_out), jnp.float32, minval=-bound, maxval=bound)
        params[f"b{i}"] = jax.random.uniform(
            kb, (1, d_out), jnp.float32, minval=-bound, maxval=bound)
    return params


def prepare_params(params):
    """Zero-pad to lane-aligned shapes; weights -> bf16, biases stay f32."""
    def pad_w(w, rows, cols):
        r, c = w.shape
        return jnp.pad(w, ((0, rows - r), (0, cols - c))).astype(jnp.bfloat16)

    def pad_b(b, cols):
        return jnp.pad(b, ((0, 0), (0, cols - b.shape[1]))).astype(jnp.float32)

    return dict(
        w1=pad_w(params["w1"], D_IN, H1P), b1=pad_b(params["b1"], H1P),
        w2=pad_w(params["w2"], H1P, H2P), b2=pad_b(params["b2"], H2P),
        w3=pad_w(params["w3"], H2P, OUTP),
        b3=params["b3"].astype(jnp.float32),        # (1, 2) -- kept unpadded
    )


def _pick_batch_tile(B, batch_tile):
    """Batch tile: bound pad waste and keep >=2 grid steps for v7x megacore."""
    if B < 16:
        n_tiles = 1
    else:
        n_tiles = max(_cdiv(B, batch_tile), 2)
    tb = _round_up(_cdiv(B, n_tiles), 8)
    Bp = _round_up(B, tb)
    return tb, Bp


def toy_model_forward(x, padded_params, *, batch_tile=1024):
    """x: (B, 512) f32. Returns (B, 2) f32."""
    B = x.shape[0]
    tb, Bp = _pick_batch_tile(B, batch_tile)

    xp = x if Bp == B else jnp.pad(x, ((0, Bp - B), (0, 0)))
    xp = xp.astype(jnp.float32)                    # kernel casts to bf16 itself

    p = padded_params
    resident = lambda shape: pl.BlockSpec(shape, lambda i: (0, 0))

    out = pl.pallas_call(
        mlp_kernel,
        out_shape=jax.ShapeDtypeStruct((Bp, D_OUT), jnp.float32),
        grid=(Bp // tb,),
        in_specs=[
            pl.BlockSpec((tb, D_IN), lambda i: (i, 0)),   # x: tiled over batch
            resident((D_IN, H1P)), resident((1, H1P)),    # weights/biases stay VMEM-resident
            resident((H1P, H2P)), resident((1, H2P)),
            resident((H2P, OUTP)), resident((1, D_OUT)),
        ],
        out_specs=pl.BlockSpec((tb, D_OUT), lambda i: (i, 0)),
        compiler_params=pltpu.CompilerParams(
            dimension_semantics=("parallel",),            # megacore-shardable batch axis
            vmem_limit_bytes=32 * 1024 * 1024,            # plenty even at tb=2048
        ),
    )(xp, p["w1"], p["b1"], p["w2"], p["b2"], p["w3"], p["b3"])

    return out[:B]


def reference_forward_f32(x, params):
    h = jnp.maximum(x @ params["w1"] + params["b1"], 0.0)
    h = jnp.maximum(h @ params["w2"] + params["b2"], 0.0)
    return h @ params["w3"] + params["b3"]


def reference_forward_bf16(x, params):
    """Emulates the kernel's dtype scheme (bf16 operands, f32 accumulation)."""
    f = lambda a: a.astype(jnp.bfloat16)
    h = jnp.dot(f(x), f(params["w1"]), preferred_element_type=jnp.float32)
    h = jnp.maximum(h + params["b1"], 0.0)
    h = jnp.dot(f(h), f(params["w2"]), preferred_element_type=jnp.float32)
    h = jnp.maximum(h + params["b2"], 0.0)
    return jnp.dot(f(h), f(params["w3"]),
                   preferred_element_type=jnp.float32) + params["b3"]


if __name__ == "__main__":
    key = jax.random.PRNGKey(0)
    key, kx = jax.random.split(key)

    params = init_params(key)
    padded = prepare_params(params)

    # Small-batch case (single grid step).
    B = 8
    x = jax.random.normal(kx, (B, D_IN), jnp.float32)
    out = jax.block_until_ready(toy_model_forward(x, padded))
    assert out.shape == (B, D_OUT), out.shape

    ref_bf16 = reference_forward_bf16(x, params)
    ref_f32 = reference_forward_f32(x, params)
    assert jnp.allclose(out, ref_bf16, atol=2e-3, rtol=2e-3), "mismatch vs. bf16 reference"
    assert jnp.allclose(out, ref_f32, atol=5e-2, rtol=5e-2), "mismatch vs. f32 reference"

    # Ragged batch exercises the multi-step parallel grid + batch padding
    # (B=40 -> tb=24, Bp=48, grid=2).
    B2 = 40
    key, kx2 = jax.random.split(key)
    x2 = jax.random.normal(kx2, (B2, D_IN), jnp.float32)
    out2 = jax.block_until_ready(toy_model_forward(x2, padded))
    assert out2.shape == (B2, D_OUT), out2.shape
    assert jnp.allclose(out2, reference_forward_bf16(x2, params), atol=2e-3, rtol=2e-3), \
        "mismatch vs. bf16 reference (batched)"

    print("KERNEL_OK")
</pallas_src>

<mosaic_0001>
module attributes {stable_mosaic.version = 11 : i64} {
  func.func @mlp_kernel(%arg0: i32, %arg1: memref<8x512xf32, #tpu.memory_space<vmem>>, %arg2: memref<512x256xbf16, #tpu.memory_space<vmem>>, %arg3: memref<1x256xf32, #tpu.memory_space<vmem>>, %arg4: memref<256x128xbf16, #tpu.memory_space<vmem>>, %arg5: memref<1x128xf32, #tpu.memory_space<vmem>>, %arg6: memref<128x128xbf16, #tpu.memory_space<vmem>>, %arg7: memref<1x2xf32, #tpu.memory_space<vmem>>, %arg8: memref<8x2xf32, #tpu.memory_space<vmem>>) attributes {dimension_semantics = [#tpu.dimension_semantics<parallel>], iteration_bounds = array<i64: 1>, scalar_prefetch = 0 : i64, scratch_operands = 0 : i64, tpu.core_type = #tpu.core_type<tc>, window_params = [{transform_indices = @transform_0, window_bounds = array<i64: 8, 512>}, {pipeline_mode = #tpu.pipeline_mode<synchronous>, transform_indices = @transform_1, window_bounds = array<i64: 512, 256>}, {pipeline_mode = #tpu.pipeline_mode<synchronous>, transform_indices = @transform_2, window_bounds = array<i64: 1, 256>}, {pipeline_mode = #tpu.pipeline_mode<synchronous>, transform_indices = @transform_3, window_bounds = array<i64: 256, 128>}, {pipeline_mode = #tpu.pipeline_mode<synchronous>, transform_indices = @transform_4, window_bounds = array<i64: 1, 128>}, {pipeline_mode = #tpu.pipeline_mode<synchronous>, transform_indices = @transform_5, window_bounds = array<i64: 128, 128>}, {pipeline_mode = #tpu.pipeline_mode<synchronous>, transform_indices = @transform_6, window_bounds = array<i64: 1, 2>}, {transform_indices = @transform_7, window_bounds = array<i64: 8, 2>}]} {
    %c0 = arith.constant 0 : index
    %c0_0 = arith.constant 0 : index
    %0 = vector.load %arg1[%c0, %c0_0] : memref<8x512xf32, #tpu.memory_space<vmem>>, vector<8x512xf32>
    %1 = arith.truncf %0 : vector<8x512xf32> to vector<8x512xbf16>
    %c0_1 = arith.constant 0 : index
    %c0_2 = arith.constant 0 : index
    %2 = vector.load %arg2[%c0_1, %c0_2] : memref<512x256xbf16, #tpu.memory_space<vmem>>, vector<512x256xbf16>
    %cst = arith.constant dense<0.000000e+00> : vector<8x256xf32>
    %3 = tpu.matmul %1, %2, %cst {dimension_numbers = #tpu.dot_dimension_numbers<[1], [0], [0], [1], [0, 0, 1, 1], [], []>} : vector<8x512xbf16>, vector<512x256xbf16>, vector<8x256xf32> -> vector<8x256xf32>
    %c0_3 = arith.constant 0 : index
    %c0_4 = arith.constant 0 : index
    %4 = vector.load %arg3[%c0_3, %c0_4] : memref<1x256xf32, #tpu.memory_space<vmem>>, vector<1x256xf32>
    %5 = vector.broadcast %4 : vector<1x256xf32> to vector<8x256xf32>
    %6 = arith.addf %3, %5 : vector<8x256xf32>
    %cst_5 = arith.constant 0.000000e+00 : f32
    %7 = vector.broadcast %cst_5 : f32 to vector<8x256xf32>
    %8 = arith.maximumf %6, %7 : vector<8x256xf32>
    %9 = arith.truncf %8 : vector<8x256xf32> to vector<8x256xbf16>
    %c0_6 = arith.constant 0 : index
    %c0_7 = arith.constant 0 : index
    %10 = vector.load %arg4[%c0_6, %c0_7] : memref<256x128xbf16, #tpu.memory_space<vmem>>, vector<256x128xbf16>
    %cst_8 = arith.constant dense<0.000000e+00> : vector<8x128xf32>
    %11 = tpu.matmul %9, %10, %cst_8 {dimension_numbers = #tpu.dot_dimension_numbers<[1], [0], [0], [1], [0, 0, 1, 1], [], []>} : vector<8x256xbf16>, vector<256x128xbf16>, vector<8x128xf32> -> vector<8x128xf32>
    %c0_9 = arith.constant 0 : index
    %c0_10 = arith.constant 0 : index
    %12 = vector.load %arg5[%c0_9, %c0_10] : memref<1x128xf32, #tpu.memory_space<vmem>>, vector<1x128xf32>
    %13 = vector.broadcast %12 : vector<1x128xf32> to vector<8x128xf32>
    %14 = arith.addf %11, %13 : vector<8x128xf32>
    %cst_11 = arith.constant 0.000000e+00 : f32
    %15 = vector.broadcast %cst_11 : f32 to vector<8x128xf32>
    %16 = arith.maximumf %14, %15 : vector<8x128xf32>
    %17 = arith.truncf %16 : vector<8x128xf32> to vector<8x128xbf16>
    %c0_12 = arith.constant 0 : index
    %c0_13 = arith.constant 0 : index
    %18 = vector.load %arg6[%c0_12, %c0_13] : memref<128x128xbf16, #tpu.memory_space<vmem>>, vector<128x128xbf16>
    %cst_14 = arith.constant dense<0.000000e+00> : vector<8x128xf32>
    %19 = tpu.matmul %17, %18, %cst_14 {dimension_numbers = #tpu.dot_dimension_numbers<[1], [0], [0], [1], [0, 0, 1, 1], [], []>} : vector<8x128xbf16>, vector<128x128xbf16>, vector<8x128xf32> -> vector<8x128xf32>
    %20 = vector.extract_strided_slice %19 {offsets = [0, 0], sizes = [8, 2], strides = [1, 1]} : vector<8x128xf32> to vector<8x2xf32>
    %c0_15 = arith.constant 0 : index
    %c0_16 = arith.constant 0 : index
    %21 = vector.load %arg7[%c0_15, %c0_16] : memref<1x2xf32, #tpu.memory_space<vmem>>, vector<1x2xf32>
    %22 = vector.broadcast %21 : vector<1x2xf32> to vector<8x2xf32>
    %23 = arith.addf %20, %22 : vector<8x2xf32>
    %c0_17 = arith.constant 0 : index
    %c0_18 = arith.constant 0 : index
    %24 = vector.load %arg8[%c0_17, %c0_18] : memref<8x2xf32, #tpu.memory_space<vmem>>, vector<8x2xf32>
    tpu.vector_store %arg8[%c0_17, %c0_18], %23 {strides = array<i32>} : memref<8x2xf32, #tpu.memory_space<vmem>>, vector<8x2xf32>,
    return
  }
  func.func @transform_0(%arg0: i32) -> (i32, i32) {
    %c0_i32 = arith.constant 0 : i32
    %c0_i32_0 = arith.constant 0 : i32
    return %arg0, %c0_i32 : i32, i32
  }
  func.func @transform_1(%arg0: i32) -> (i32, i32) {
    %c0_i32 = arith.constant 0 : i32
    %c0_i32_0 = arith.constant 0 : i32
    %c0_i32_1 = arith.constant 0 : i32
    return %c0_i32, %c0_i32_0 : i32, i32
  }
  func.func @transform_2(%arg0: i32) -> (i32, i32) {
    %c0_i32 = arith.constant 0 : i32
    %c0_i32_0 = arith.constant 0 : i32
    %c0_i32_1 = arith.constant 0 : i32
    return %c0_i32, %c0_i32_0 : i32, i32
  }
  func.func @transform_3(%arg0: i32) -> (i32, i32) {
    %c0_i32 = arith.constant 0 : i32
    %c0_i32_0 = arith.constant 0 : i32
    %c0_i32_1 = arith.constant 0 : i32
    return %c0_i32, %c0_i32_0 : i32, i32
  }
  func.func @transform_4(%arg0: i32) -> (i32, i32) {
    %c0_i32 = arith.constant 0 : i32
    %c0_i32_0 = arith.constant 0 : i32
    %c0_i32_1 = arith.constant 0 : i32
    return %c0_i32, %c0_i32_0 : i32, i32
  }
  func.func @transform_5(%arg0: i32) -> (i32, i32) {
    %c0_i32 = arith.constant 0 : i32
    %c0_i32_0 = arith.constant 0 : i32
    %c0_i32_1 = arith.constant 0 : i32
    return %c0_i32, %c0_i32_0 : i32, i32
  }
  func.func @transform_6(%arg0: i32) -> (i32, i32) {
    %c0_i32 = arith.constant 0 : i32
    %c0_i32_0 = arith.constant 0 : i32
    %c0_i32_1 = arith.constant 0 : i32
    return %c0_i32, %c0_i32_0 : i32, i32
  }
  func.func @transform_7(%arg0: i32) -> (i32, i32) {
    %c0_i32 = arith.constant 0 : i32
    %c0_i32_0 = arith.constant 0 : i32
    return %arg0, %c0_i32 : i32, i32
  }
}

</mosaic_0001>

<llo_original>
// kernel: tpu_custom_call.1
$region0: #{tpu_custom_call.1}
  #allocation0 [shape = 'u32[]', space=smem, size = 0x4, offset = 0x4, fixed_abs, tag = 'smem constant byte address 0x4 - core index']
  #allocation1 [shape = 'u32[144,128]{1,0:T(1,128)}', space=vmem, size = 0x12000, scoped, tag = 'internal scratch']
  %s0 = inlined_call_operand.hbm [shape: f32[8,512], index: 0, kind: input, shape index: {}]
  %s1 = inlined_call_operand.hbm [shape: bf16[512,256], index: 1, kind: input, shape index: {}]
  %s2 = inlined_call_operand.vmem [shape: f32[1,256], index: 2, kind: input, shape index: {}]
  %s3 = inlined_call_operand.hbm [shape: bf16[256,128], index: 3, kind: input, shape index: {}]
  %s4 = inlined_call_operand.vmem [shape: f32[1,128], index: 4, kind: input, shape index: {}]
  %s5 = inlined_call_operand.hbm [shape: bf16[128,128], index: 5, kind: input, shape index: {}]
  %s6 = inlined_call_operand.vmem [shape: f32[1,2], index: 6, kind: input, shape index: {}]
  %s7 = inlined_call_operand.vmem [shape: f32[8,2], index: 7, kind: output, shape index: {}]
  %s8 = sld [smem:[#allocation0]]
  $region54: #{tpu_custom_call.1} parent=0
    _
  %s10 = ssub.s32 1, %s8
  %s11 = scalar_select 0, %s10, %s8
  $region1: #{tpu_custom_call.1} parent=0
    #allocation2 [shape = 'u8[16384]{0}', space=vmem, size = 0x4000, scoped, tag = 'input window, operand 0, single buffered']
    #allocation3 [shape = 's32[1]{0}', space=sflag, size = 0x4, scoped, tag = 'scoped memory for tpu_custom_call.1']
    #allocation4 [shape = 'u8[262144]{0}', space=vmem, size = 0x40000, scoped, tag = 'input window, operand 1, single buffered']
    #allocation5 [shape = 's32[1]{0}', space=sflag, size = 0x4, scoped, tag = 'scoped memory for tpu_custom_call.1']
    #allocation6 [shape = 'u8[65536]{0}', space=vmem, size = 0x10000, scoped, tag = 'input window, operand 3, single buffered']
    #allocation7 [shape = 'u8[32768]{0}', space=vmem, size = 0x8000, scoped, tag = 'input window, operand 5, single buffered']
    #allocation8 [shape = 's32[1]{0}', space=sflag, size = 0x4, scoped, tag = 'scoped memory for tpu_custom_call.1']
    %12 = vsyncpa [#allocation3], 0
    %13 = vsyncpa [#allocation5], 0
    %14 = vsyncpa [#allocation8], 0
    // Predicated region
    $region2: #{tpu_custom_call.1} parent=1 // pred_check
      _
    $region3: #{tpu_custom_call.1} parent=1 // pred_check_branch
      %16 = sbr.rel (0) target = $region5
    $region4: #{tpu_custom_call.1} parent=1 // pred_region
      %s18 = ssub.s32 512, 512
      %19 = vsyncadd [#allocation3], %s18
      %s21 = sshll.u32 [#allocation2], 4
      %s22 = int_to_ptr.vmem [resolvable:$true] %s21
      %24 = dma.hbm_to_vmem [thread:$0]  %s0, 512, %s22, [#allocation3]
    $region5: #{tpu_custom_call.1} parent=1 // pred_fallthru
      _
    // Predicated region
    $region6: #{tpu_custom_call.1} parent=1 // pred_check
      _
    $region7: #{tpu_custom_call.1} parent=1 // pred_check_branch
      %26 = sbr.rel (0) target = $region9
    $region8: #{tpu_custom_call.1} parent=1 // pred_region
      %s28 = ssub.s32 8192, 8192
      %29 = vsyncadd [#allocation5], %s28
      %s30 = sshll.u32 [#allocation4], 4
      %s31 = int_to_ptr.vmem [resolvable:$true] %s30
      %36 = dma.hbm_to_vmem [thread:$0]  %s1, 8192, %s31, [#allocation5], 128, 128, 8
    $region9: #{tpu_custom_call.1} parent=1 // pred_fallthru
      _
    // Predicated region
    $region10: #{tpu_custom_call.1} parent=1 // pred_check
      _
    $region11: #{tpu_custom_call.1} parent=1 // pred_check_branch
      %38 = sbr.rel (0) target = $region13
    $region12: #{tpu_custom_call.1} parent=1 // pred_region
      _
    $region13: #{tpu_custom_call.1} parent=1 // pred_fallthru
      _
    // Predicated region
    $region14: #{tpu_custom_call.1} parent=1 // pred_check
      _
    $region15: #{tpu_custom_call.1} parent=1 // pred_check_branch
      %40 = sbr.rel (0) target = $region17
    $region16: #{tpu_custom_call.1} parent=1 // pred_region
      %s42 = ssub.s32 2048, 2048
      %43 = vsyncadd [#allocation5], %s42
      %s44 = sshll.u32 [#allocation6], 4
      %s45 = int_to_ptr.vmem [resolvable:$true] %s44
      %50 = dma.hbm_to_vmem [thread:$0]  %s3, 2048, %s45, [#allocation5], 64, 64, 4
    $region17: #{tpu_custom_call.1} parent=1 // pred_fallthru
      _
    // Predicated region
    $region18: #{tpu_custom_call.1} parent=1 // pred_check
      _
    $region19: #{tpu_custom_call.1} parent=1 // pred_check_branch
      %52 = sbr.rel (0) target = $region21
    $region20: #{tpu_custom_call.1} parent=1 // pred_region
      _
    $region21: #{tpu_custom_call.1} parent=1 // pred_fallthru
      _
    // Predicated region
    $region22: #{tpu_custom_call.1} parent=1 // pred_check
      _
    $region23: #{tpu_custom_call.1} parent=1 // pred_check_branch
      %54 = sbr.rel (0) target = $region25
    $region24: #{tpu_custom_call.1} parent=1 // pred_region
      %s56 = ssub.s32 1024, 1024
      %57 = vsyncadd [#allocation8], %s56
      %s58 = sshll.u32 [#allocation7], 4
      %s59 = int_to_ptr.vmem [resolvable:$true] %s58
      %64 = dma.hbm_to_vmem [thread:$0]  %s5, 1024, %s59, [#allocation8], 64, 64, 4
    $region25: #{tpu_custom_call.1} parent=1 // pred_fallthru
      _
    // Predicated region
    $region26: #{tpu_custom_call.1} parent=1 // pred_check
      _
    $region27: #{tpu_custom_call.1} parent=1 // pred_check_branch
      %66 = sbr.rel (0) target = $region29
    $region28: #{tpu_custom_call.1} parent=1 // pred_region
      _
    $region29: #{tpu_custom_call.1} parent=1 // pred_fallthru
      _
    // Predicated region
    $region30: #{tpu_custom_call.1} parent=1 // pred_check
      _
    $region31: #{tpu_custom_call.1} parent=1 // pred_check_branch
      %68 = sbr.rel (0) target = $region33
    $region32: #{tpu_custom_call.1} parent=1 // pred_region
      %69 = dma.done [#allocation3], 512
    $region33: #{tpu_custom_call.1} parent=1 // pred_fallthru
      _
    // Predicated region
    $region34: #{tpu_custom_call.1} parent=1 // pred_check
      _
    $region35: #{tpu_custom_call.1} parent=1 // pred_check_branch
      %71 = sbr.rel (0) target = $region37
    $region36: #{tpu_custom_call.1} parent=1 // pred_region
      %72 = dma.done [#allocation5], 8192
    $region37: #{tpu_custom_call.1} parent=1 // pred_fallthru
      _
    // Predicated region
    $region38: #{tpu_custom_call.1} parent=1 // pred_check
      _
    $region39: #{tpu_custom_call.1} parent=1 // pred_check_branch
      %74 = sbr.rel (0) target = $region41
    $region40: #{tpu_custom_call.1} parent=1 // pred_region
      %75 = dma.done [#allocation5], 2048
    $region41: #{tpu_custom_call.1} parent=1 // pred_fallthru
      _
    // Predicated region
    $region42: #{tpu_custom_call.1} parent=1 // pred_check
      _
    $region43: #{tpu_custom_call.1} parent=1 // pred_check_branch
      %77 = sbr.rel (0) target = $region45
    $region44: #{tpu_custom_call.1} parent=1 // pred_region
      %78 = dma.done [#allocation8], 1024
    $region45: #{tpu_custom_call.1} parent=1 // pred_fallthru
      _
    %v80 = vld [vmem:[#allocation2] sm:$0xff]
    %v81 = vld [vmem:[#allocation2 + $0x8] sm:$0xff]
    %v82 = vld [vmem:[#allocation2 + $0x10] sm:$0xff]
    %v83 = vld [vmem:[#allocation2 + $0x18] sm:$0xff]
    %v84 = vpack.c.bf16 %v80, %v80
    %v85 = vpack.c.bf16 %v81, %v81
    %v86 = vpack.c.bf16 %v82, %v82
    %v87 = vpack.c.bf16 %v83, %v83
    %v88 = vld [vmem:[#allocation4] sm:$0xff]
    %v89 = vld [vmem:[#allocation4 + $0x8] sm:$0xff]
    %v90 = vld [vmem:[#allocation4 + $0x10] sm:$0xff]
    %v91 = vld [vmem:[#allocation4 + $0x18] sm:$0xff]
    %v92 = vld [vmem:[#allocation4 + $0x20] sm:$0xff]
    %v93 = vld [vmem:[#allocation4 + $0x28] sm:$0xff]
    %v94 = vld [vmem:[#allocation4 + $0x30] sm:$0xff]
    %v95 = vld [vmem:[#allocation4 + $0x38] sm:$0xff]
    %v96 = vld [vmem:[#allocation4 + $0x40] sm:$0xff]
    %v97 = vld [vmem:[#allocation4 + $0x48] sm:$0xff]
    %v98 = vld [vmem:[#allocation4 + $0x50] sm:$0xff]
    %v99 = vld [vmem:[#allocation4 + $0x58] sm:$0xff]
    %v100 = vld [vmem:[#allocation4 + $0x60] sm:$0xff]
    %v101 = vld [vmem:[#allocation4 + $0x68] sm:$0xff]
    %v102 = vld [vmem:[#allocation4 + $0x70] sm:$0xff]
    %v103 = vld [vmem:[#allocation4 + $0x78] sm:$0xff]
    %v104 = vld [vmem:[#allocation4 + $0x80] sm:$0xff]
    %v105 = vld [vmem:[#allocation4 + $0x88] sm:$0xff]
    %v106 = vld [vmem:[#allocation4 + $0x90] sm:$0xff]
    %v107 = vld [vmem:[#allocation4 + $0x98] sm:$0xff]
    %v108 = vld [vmem:[#allocation4 + $0xa0] sm:$0xff]
    %v109 = vld [vmem:[#allocation4 + $0xa8] sm:$0xff]
    %v110 = vld [vmem:[#allocation4 + $0xb0] sm:$0xff]
    %v111 = vld [vmem:[#allocation4 + $0xb8] sm:$0xff]
    %v112 = vld [vmem:[#allocation4 + $0xc0] sm:$0xff]
    %v113 = vld [vmem:[#allocation4 + $0xc8] sm:$0xff]
    %v114 = vld [vmem:[#allocation4 + $0xd0] sm:$0xff]
    %v115 = vld [vmem:[#allocation4 + $0xd8] sm:$0xff]
    %v116 = vld [vmem:[#allocation4 + $0xe0] sm:$0xff]
    %v117 = vld [vmem:[#allocation4 + $0xe8] sm:$0xff]
    %v118 = vld [vmem:[#allocation4 + $0xf0] sm:$0xff]
    %v119 = vld [vmem:[#allocation4 + $0xf8] sm:$0xff]
    %v120 = vld [vmem:[#allocation4 + $0x100] sm:$0xff]
    %v121 = vld [vmem:[#allocation4 + $0x108] sm:$0xff]
    %v122 = vld [vmem:[#allocation4 + $0x110] sm:$0xff]
    %v123 = vld [vmem:[#allocation4 + $0x118] sm:$0xff]
    %v124 = vld [vmem:[#allocation4 + $0x120] sm:$0xff]
    %v125 = vld [vmem:[#allocation4 + $0x128] sm:$0xff]
    %v126 = vld [vmem:[#allocation4 + $0x130] sm:$0xff]
    %v127 = vld [vmem:[#allocation4 + $0x138] sm:$0xff]
    %v128 = vld [vmem:[#allocation4 + $0x140] sm:$0xff]
    %v129 = vld [vmem:[#allocation4 + $0x148] sm:$0xff]
    %v130 = vld [vmem:[#allocation4 + $0x150] sm:$0xff]
    %v131 = vld [vmem:[#allocation4 + $0x158] sm:$0xff]
    %v132 = vld [vmem:[#allocation4 + $0x160] sm:$0xff]
    %v133 = vld [vmem:[#allocation4 + $0x168] sm:$0xff]
    %v134 = vld [vmem:[#allocation4 + $0x170] sm:$0xff]
    %v135 = vld [vmem:[#allocation4 + $0x178] sm:$0xff]
    %v136 = vld [vmem:[#allocation4 + $0x180] sm:$0xff]
    %v137 = vld [vmem:[#allocation4 + $0x188] sm:$0xff]
    %v138 = vld [vmem:[#allocation4 + $0x190] sm:$0xff]
    %v139 = vld [vmem:[#allocation4 + $0x198] sm:$0xff]
    %v140 = vld [vmem:[#allocation4 + $0x1a0] sm:$0xff]
    %v141 = vld [vmem:[#allocation4 + $0x1a8] sm:$0xff]
    %v142 = vld [vmem:[#allocation4 + $0x1b0] sm:$0xff]
    %v143 = vld [vmem:[#allocation4 + $0x1b8] sm:$0xff]
    %v144 = vld [vmem:[#allocation4 + $0x1c0] sm:$0xff]
    %v145 = vld [vmem:[#allocation4 + $0x1c8] sm:$0xff]
    %v146 = vld [vmem:[#allocation4 + $0x1d0] sm:$0xff]
    %v147 = vld [vmem:[#allocation4 + $0x1d8] sm:$0xff]
    %v148 = vld [vmem:[#allocation4 + $0x1e0] sm:$0xff]
    %v149 = vld [vmem:[#allocation4 + $0x1e8] sm:$0xff]
    %v150 = vld [vmem:[#allocation4 + $0x1f0] sm:$0xff]
    %v151 = vld [vmem:[#allocation4 + $0x1f8] sm:$0xff]
    %v152 = vld [vmem:[%s2] sm:$0x3]
    %v154 = vlaneseq
    %v155 = vshrl.u32 %v154, 7
    %v156 = vsub.s32 0, %v155
    %v157 = vrot.slane %v152, %v156
    %v158 = vlaneseq
    %v159 = vshrl.u32 %v158, 7
    %v160 = vsub.s32 1, %v159
    %v161 = vrot.slane %v152, %v160
    %v228 = vunpack.c.l.b16 %v88
    %v229 = vunpack.c.h.b16 %v88
    %v230 = vunpack.c.l.b16 %v89
    %v231 = vunpack.c.h.b16 %v89
    %v232 = vunpack.c.l.b16 %v90
    %v233 = vunpack.c.h.b16 %v90
    %v234 = vunpack.c.l.b16 %v91
    %v235 = vunpack.c.h.b16 %v91
    %v236 = vunpack.c.l.b16 %v92
    %v237 = vunpack.c.h.b16 %v92
    %v238 = vunpack.c.l.b16 %v93
    %v239 = vunpack.c.h.b16 %v93
    %v240 = vunpack.c.l.b16 %v94
    %v241 = vunpack.c.h.b16 %v94
    %v242 = vunpack.c.l.b16 %v95
    %v243 = vunpack.c.h.b16 %v95
    %v244 = vunpack.c.l.b16 %v96
    %v245 = vunpack.c.h.b16 %v96
    %v246 = vunpack.c.l.b16 %v97
    %v247 = vunpack.c.h.b16 %v97
    %v248 = vunpack.c.l.b16 %v98
    %v249 = vunpack.c.h.b16 %v98
    %v250 = vunpack.c.l.b16 %v99
    %v251 = vunpack.c.h.b16 %v99
    %v252 = vunpack.c.l.b16 %v100
    %v253 = vunpack.c.h.b16 %v100
    %v254 = vunpack.c.l.b16 %v101
    %v255 = vunpack.c.h.b16 %v101
    %v256 = vunpack.c.l.b16 %v102
    %v257 = vunpack.c.h.b16 %v102
    %v258 = vunpack.c.l.b16 %v103
    %v259 = vunpack.c.h.b16 %v103
    %v260 = vunpack.c.l.b16 %v104
    %v261 = vunpack.c.h.b16 %v104
    %v262 = vunpack.c.l.b16 %v105
    %v263 = vunpack.c.h.b16 %v105
    %v264 = vunpack.c.l.b16 %v106
    %v265 = vunpack.c.h.b16 %v106
    %v266 = vunpack.c.l.b16 %v107
    %v267 = vunpack.c.h.b16 %v107
    %v268 = vunpack.c.l.b16 %v108
    %v269 = vunpack.c.h.b16 %v108
    %v270 = vunpack.c.l.b16 %v109
    %v271 = vunpack.c.h.b16 %v109
    %v272 = vunpack.c.l.b16 %v110
    %v273 = vunpack.c.h.b16 %v110
    %v274 = vunpack.c.l.b16 %v111
    %v275 = vunpack.c.h.b16 %v111
    %v276 = vunpack.c.l.b16 %v112
    %v277 = vunpack.c.h.b16 %v112
    %v278 = vunpack.c.l.b16 %v113
    %v279 = vunpack.c.h.b16 %v113
    %v280 = vunpack.c.l.b16 %v114
    %v281 = vunpack.c.h.b16 %v114
    %v282 = vunpack.c.l.b16 %v115
    %v283 = vunpack.c.h.b16 %v115
    %v284 = vunpack.c.l.b16 %v116
    %v285 = vunpack.c.h.b16 %v116
    %v286 = vunpack.c.l.b16 %v117
    %v287 = vunpack.c.h.b16 %v117
    %v288 = vunpack.c.l.b16 %v118
    %v289 = vunpack.c.h.b16 %v118
    %v290 = vunpack.c.l.b16 %v119
    %v291 = vunpack.c.h.b16 %v119
    %v292 = vunpack.c.l.b16 %v120
    %v293 = vunpack.c.h.b16 %v120
    %v294 = vunpack.c.l.b16 %v121
    %v295 = vunpack.c.h.b16 %v121
    %v296 = vunpack.c.l.b16 %v122
    %v297 = vunpack.c.h.b16 %v122
    %v298 = vunpack.c.l.b16 %v123
    %v299 = vunpack.c.h.b16 %v123
    %v300 = vunpack.c.l.b16 %v124
    %v301 = vunpack.c.h.b16 %v124
    %v302 = vunpack.c.l.b16 %v125
    %v303 = vunpack.c.h.b16 %v125
    %v304 = vunpack.c.l.b16 %v126
    %v305 = vunpack.c.h.b16 %v126
    %v306 = vunpack.c.l.b16 %v127
    %v307 = vunpack.c.h.b16 %v127
    %v308 = vunpack.c.l.b16 %v128
    %v309 = vunpack.c.h.b16 %v128
    %v310 = vunpack.c.l.b16 %v129
    %v311 = vunpack.c.h.b16 %v129
    %v312 = vunpack.c.l.b16 %v130
    %v313 = vunpack.c.h.b16 %v130
    %v314 = vunpack.c.l.b16 %v131
    %v315 = vunpack.c.h.b16 %v131
    %v316 = vunpack.c.l.b16 %v132
    %v317 = vunpack.c.h.b16 %v132
    %v318 = vunpack.c.l.b16 %v133
    %v319 = vunpack.c.h.b16 %v133
    %v320 = vunpack.c.l.b16 %v134
    %v321 = vunpack.c.h.b16 %v134
    %v322 = vunpack.c.l.b16 %v135
    %v323 = vunpack.c.h.b16 %v135
    %v324 = vunpack.c.l.b16 %v136
    %v325 = vunpack.c.h.b16 %v136
    %v326 = vunpack.c.l.b16 %v137
    %v327 = vunpack.c.h.b16 %v137
    %v328 = vunpack.c.l.b16 %v138
    %v329 = vunpack.c.h.b16 %v138
    %v330 = vunpack.c.l.b16 %v139
    %v331 = vunpack.c.h.b16 %v139
    %v332 = vunpack.c.l.b16 %v140
    %v333 = vunpack.c.h.b16 %v140
    %v334 = vunpack.c.l.b16 %v141
    %v335 = vunpack.c.h.b16 %v141
    %v336 = vunpack.c.l.b16 %v142
    %v337 = vunpack.c.h.b16 %v142
    %v338 = vunpack.c.l.b16 %v143
    %v339 = vunpack.c.h.b16 %v143
    %v340 = vunpack.c.l.b16 %v144
    %v341 = vunpack.c.h.b16 %v144
    %v342 = vunpack.c.l.b16 %v145
    %v343 = vunpack.c.h.b16 %v145
    %v344 = vunpack.c.l.b16 %v146
    %v345 = vunpack.c.h.b16 %v146
    %v346 = vunpack.c.l.b16 %v147
    %v347 = vunpack.c.h.b16 %v147
    %v348 = vunpack.c.l.b16 %v148
    %v349 = vunpack.c.h.b16 %v148
    %v350 = vunpack.c.l.b16 %v149
    %v351 = vunpack.c.h.b16 %v149
    %v352 = vunpack.c.l.b16 %v150
    %v353 = vunpack.c.h.b16 %v150
    %v354 = vunpack.c.l.b16 %v151
    %v355 = vunpack.c.h.b16 %v151
    %v356 = vpack.c.b16 %v230, %v228
    %v357 = vpack.c.b16 %v231, %v229
    %v358 = vpack.c.b16 %v234, %v232
    %v359 = vpack.c.b16 %v235, %v233
    %v360 = vpack.c.b16 %v238, %v236
    %v361 = vpack.c.b16 %v239, %v237
    %v362 = vpack.c.b16 %v242, %v240
    %v363 = vpack.c.b16 %v243, %v241
    %v364 = vpack.c.b16 %v246, %v244
    %v365 = vpack.c.b16 %v247, %v245
    %v366 = vpack.c.b16 %v250, %v248
    %v367 = vpack.c.b16 %v251, %v249
    %v368 = vpack.c.b16 %v254, %v252
    %v369 = vpack.c.b16 %v255, %v253
    %v370 = vpack.c.b16 %v258, %v256
    %v371 = vpack.c.b16 %v259, %v257
    %v372 = vpack.c.b16 %v262, %v260
    %v373 = vpack.c.b16 %v263, %v261
    %v374 = vpack.c.b16 %v266, %v264
    %v375 = vpack.c.b16 %v267, %v265
    %v376 = vpack.c.b16 %v270, %v268
    %v377 = vpack.c.b16 %v271, %v269
    %v378 = vpack.c.b16 %v274, %v272
    %v379 = vpack.c.b16 %v275, %v273
    %v380 = vpack.c.b16 %v278, %v276
    %v381 = vpack.c.b16 %v279, %v277
    %v382 = vpack.c.b16 %v282, %v280
    %v383 = vpack.c.b16 %v283, %v281
    %v384 = vpack.c.b16 %v286, %v284
    %v385 = vpack.c.b16 %v287, %v285
    %v386 = vpack.c.b16 %v290, %v288
    %v387 = vpack.c.b16 %v291, %v289
    %v388 = vpack.c.b16 %v294, %v292
    %v389 = vpack.c.b16 %v295, %v293
    %v390 = vpack.c.b16 %v298, %v296
    %v391 = vpack.c.b16 %v299, %v297
    %v392 = vpack.c.b16 %v302, %v300
    %v393 = vpack.c.b16 %v303, %v301
    %v394 = vpack.c.b16 %v306, %v304
    %v395 = vpack.c.b16 %v307, %v305
    %v396 = vpack.c.b16 %v310, %v308
    %v397 = vpack.c.b16 %v311, %v309
    %v398 = vpack.c.b16 %v314, %v312
    %v399 = vpack.c.b16 %v315, %v313
    %v400 = vpack.c.b16 %v318, %v316
    %v401 = vpack.c.b16 %v319, %v317
    %v402 = vpack.c.b16 %v322, %v320
    %v403 = vpack.c.b16 %v323, %v321
    %v404 = vpack.c.b16 %v326, %v324
    %v405 = vpack.c.b16 %v327, %v325
    %v406 = vpack.c.b16 %v330, %v328
    %v407 = vpack.c.b16 %v331, %v329
    %v408 = vpack.c.b16 %v334, %v332
    %v409 = vpack.c.b16 %v335, %v333
    %v410 = vpack.c.b16 %v338, %v336
    %v411 = vpack.c.b16 %v339, %v337
    %v412 = vpack.c.b16 %v342, %v340
    %v413 = vpack.c.b16 %v343, %v341
    %v414 = vpack.c.b16 %v346, %v344
    %v415 = vpack.c.b16 %v347, %v345
    %v416 = vpack.c.b16 %v350, %v348
    %v417 = vpack.c.b16 %v351, %v349
    %v418 = vpack.c.b16 %v354, %v352
    %v419 = vpack.c.b16 %v355, %v353
    %484 = vmatprep.subr.bf16.mxu0 %v357
    %485 = vmatpush1.bf16.msra.mxu0 %v356
    %486 = vmatprep.subr.bf16.mxu0 %v359
    %487 = vmatpush1.bf16.msra.mxu0 %v358
    %488 = vmatprep.subr.bf16.mxu0 %v361
    %489 = vmatpush1.bf16.msra.mxu0 %v360
    %490 = vmatprep.subr.bf16.mxu0 %v363
    %491 = vmatpush1.bf16.msra.mxu0 %v362
    %492 = vmatprep.subr.bf16.mxu0 %v365
    %493 = vmatpush1.bf16.msra.mxu0 %v364
    %494 = vmatprep.subr.bf16.mxu0 %v367
    %495 = vmatpush1.bf16.msra.mxu0 %v366
    %496 = vmatprep.subr.bf16.mxu0 %v369
    %497 = vmatpush1.bf16.msra.mxu0 %v368
    %498 = vmatprep.subr.bf16.mxu0 %v371
    %499 = vmatpush1.bf16.msra.mxu0 %v370
    %500 = vmatprep.subr.bf16.mxu0 %v373
    %501 = vmatpush1.bf16.msra.mxu0 %v372
    %502 = vmatprep.subr.bf16.mxu0 %v375
    %503 = vmatpush1.bf16.msra.mxu0 %v374
    %504 = vmatprep.subr.bf16.mxu0 %v377
    %505 = vmatpush1.bf16.msra.mxu0 %v376
    %506 = vmatprep.subr.bf16.mxu0 %v379
    %507 = vmatpush1.bf16.msra.mxu0 %v378
    %508 = vmatprep.subr.bf16.mxu0 %v381
    %509 = vmatpush1.bf16.msra.mxu0 %v380
    %510 = vmatprep.subr.bf16.mxu0 %v383
    %511 = vmatpush1.bf16.msra.mxu0 %v382
    %512 = vmatprep.subr.bf16.mxu0 %v385
    %513 = vmatpush1.bf16.msra.mxu0 %v384
    %514 = vmatprep.subr.bf16.mxu0 %v387
    %515 = vmatpush1.bf16.msra.mxu0 %v386
    %516 = vmatprep.mubr.bf16.mxu0 %v85
    %517 = vmatmul.mubr.bf16.gmra.mrb[0].mxu0 %v84
    %v518 = vpop.f32.mrb[0].mxu0
    %v519 = vadd.f32 %v157, %v518
    %v520 = vpop.f32.mrb[0].mxu0
    %v521 = vadd.f32 %v161, %v520
    %v522 = vpop.f32.mrb[0].mxu0
    %v523 = vpop.f32.mrb[0].mxu0
    %524 = vdwg.mxu0
    %525 = vmatprep.subr.bf16.mxu0 %v389
    %526 = vmatpush1.bf16.msra.mxu0 %v388
    %527 = vmatprep.subr.bf16.mxu0 %v391
    %528 = vmatpush1.bf16.msra.mxu0 %v390
    %529 = vmatprep.subr.bf16.mxu0 %v393
    %530 = vmatpush1.bf16.msra.mxu0 %v392
    %531 = vmatprep.subr.bf16.mxu0 %v395
    %532 = vmatpush1.bf16.msra.mxu0 %v394
    %533 = vmatprep.subr.bf16.mxu0 %v397
    %534 = vmatpush1.bf16.msra.mxu0 %v396
    %535 = vmatprep.subr.bf16.mxu0 %v399
    %536 = vmatpush1.bf16.msra.mxu0 %v398
    %537 = vmatprep.subr.bf16.mxu0 %v401
    %538 = vmatpush1.bf16.msra.mxu0 %v400
    %539 = vmatprep.subr.bf16.mxu0 %v403
    %540 = vmatpush1.bf16.msra.mxu0 %v402
    %541 = vmatprep.subr.bf16.mxu0 %v405
    %542 = vmatpush1.bf16.msra.mxu0 %v404
    %543 = vmatprep.subr.bf16.mxu0 %v407
    %544 = vmatpush1.bf16.msra.mxu0 %v406
    %545 = vmatprep.subr.bf16.mxu0 %v409
    %546 = vmatpush1.bf16.msra.mxu0 %v408
    %547 = vmatprep.subr.bf16.mxu0 %v411
    %548 = vmatpush1.bf16.msra.mxu0 %v410
    %549 = vmatprep.subr.bf16.mxu0 %v413
    %550 = vmatpush1.bf16.msra.mxu0 %v412
    %551 = vmatprep.subr.bf16.mxu0 %v415
    %552 = vmatpush1.bf16.msra.mxu0 %v414
    %553 = vmatprep.subr.bf16.mxu0 %v417
    %554 = vmatpush1.bf16.msra.mxu0 %v416
    %555 = vmatprep.subr.bf16.mxu0 %v419
    %556 = vmatpush1.bf16.msra.mxu0 %v418
    %557 = vmatprep.mubr.bf16.mxu0 %v87
    %558 = vmatmul.mubr.bf16.gmra.mrb[0].mxu0 %v86
    %v559 = vpop.f32.mrb[0].mxu0
    %v560 = vadd.f32 %v519, %v559
    %v561 = vpop.f32.mrb[0].mxu0
    %v562 = vadd.f32 %v521, %v561
    %v563 = vpop.f32.mrb[0].mxu0
    %v564 = vpop.f32.mrb[0].mxu0
    %565 = vdwg.mxu0
    %v566 = vmax.f32 %v560, 0.0
    %v567 = vmax.f32 %v562, 0.0
    %v568 = vpack.c.bf16 %v566, %v566
    %v569 = vpack.c.bf16 %v567, %v567
    %v570 = vld [vmem:[#allocation6] sm:$0xf]
    %v571 = vld [vmem:[#allocation6 + $0x4] sm:$0xf]
    %v572 = vld [vmem:[#allocation6 + $0x8] sm:$0xf]
    %v573 = vld [vmem:[#allocation6 + $0xc] sm:$0xf]
    %v574 = vld [vmem:[#allocation6 + $0x10] sm:$0xf]
    %v575 = vld [vmem:[#allocation6 + $0x14] sm:$0xf]
    %v576 = vld [vmem:[#allocation6 + $0x18] sm:$0xf]
    %v577 = vld [vmem:[#allocation6 + $0x1c] sm:$0xf]
    %v578 = vld [vmem:[#allocation6 + $0x20] sm:$0xf]
    %v579 = vld [vmem:[#allocation6 + $0x24] sm:$0xf]
    %v580 = vld [vmem:[#allocation6 + $0x28] sm:$0xf]
    %v581 = vld [vmem:[#allocation6 + $0x2c] sm:$0xf]
    %v582 = vld [vmem:[#allocation6 + $0x30] sm:$0xf]
    %v583 = vld [vmem:[#allocation6 + $0x34] sm:$0xf]
    %v584 = vld [vmem:[#allocation6 + $0x38] sm:$0xf]
    %v585 = vld [vmem:[#allocation6 + $0x3c] sm:$0xf]
    %v586 = vld [vmem:[#allocation6 + $0x40] sm:$0xf]
    %v587 = vld [vmem:[#allocation6 + $0x44] sm:$0xf]
    %v588 = vld [vmem:[#allocation6 + $0x48] sm:$0xf]
    %v589 = vld [vmem:[#allocation6 + $0x4c] sm:$0xf]
    %v590 = vld [vmem:[#allocation6 + $0x50] sm:$0xf]
    %v591 = vld [vmem:[#allocation6 + $0x54] sm:$0xf]
    %v592 = vld [vmem:[#allocation6 + $0x58] sm:$0xf]
    %v593 = vld [vmem:[#allocation6 + $0x5c] sm:$0xf]
    %v594 = vld [vmem:[#allocation6 + $0x60] sm:$0xf]
    %v595 = vld [vmem:[#allocation6 + $0x64] sm:$0xf]
    %v596 = vld [vmem:[#allocation6 + $0x68] sm:$0xf]
    %v597 = vld [vmem:[#allocation6 + $0x6c] sm:$0xf]
    %v598 = vld [vmem:[#allocation6 + $0x70] sm:$0xf]
    %v599 = vld [vmem:[#allocation6 + $0x74] sm:$0xf]
    %v600 = vld [vmem:[#allocation6 + $0x78] sm:$0xf]
    %v601 = vld [vmem:[#allocation6 + $0x7c] sm:$0xf]
    %v602 = vld [vmem:[%s4] sm:$0x1]
    %v604 = vlaneseq
    %v605 = vshrl.u32 %v604, 7
    %v606 = vsub.s32 0, %v605
    %v607 = vrot.slane %v602, %v606
    %v641 = vunpack.c.l.b16 %v570
    %v642 = vunpack.c.l.b16 %v571
    %v643 = vunpack.c.l.b16 %v572
    %v644 = vunpack.c.l.b16 %v573
    %v645 = vunpack.c.l.b16 %v574
    %v646 = vunpack.c.l.b16 %v575
    %v647 = vunpack.c.l.b16 %v576
    %v648 = vunpack.c.l.b16 %v577
    %v649 = vunpack.c.l.b16 %v578
    %v650 = vunpack.c.l.b16 %v579
    %v651 = vunpack.c.l.b16 %v580
    %v652 = vunpack.c.l.b16 %v581
    %v653 = vunpack.c.l.b16 %v582
    %v654 = vunpack.c.l.b16 %v583
    %v655 = vunpack.c.l.b16 %v584
    %v656 = vunpack.c.l.b16 %v585
    %v657 = vunpack.c.l.b16 %v586
    %v658 = vunpack.c.l.b16 %v587
    %v659 = vunpack.c.l.b16 %v588
    %v660 = vunpack.c.l.b16 %v589
    %v661 = vunpack.c.l.b16 %v590
    %v662 = vunpack.c.l.b16 %v591
    %v663 = vunpack.c.l.b16 %v592
    %v664 = vunpack.c.l.b16 %v593
    %v665 = vunpack.c.l.b16 %v594
    %v666 = vunpack.c.l.b16 %v595
    %v667 = vunpack.c.l.b16 %v596
    %v668 = vunpack.c.l.b16 %v597
    %v669 = vunpack.c.l.b16 %v598
    %v670 = vunpack.c.l.b16 %v599
    %v671 = vunpack.c.l.b16 %v600
    %v672 = vunpack.c.l.b16 %v601
    %v673 = vpack.c.b16 %v642, %v641
    %v674 = vpack.c.b16 %v644, %v643
    %v675 = vpack.c.b16 %v646, %v645
    %v676 = vpack.c.b16 %v648, %v647
    %v677 = vpack.c.b16 %v650, %v649
    %v678 = vpack.c.b16 %v652, %v651
    %v679 = vpack.c.b16 %v654, %v653
    %v680 = vpack.c.b16 %v656, %v655
    %v681 = vpack.c.b16 %v658, %v657
    %v682 = vpack.c.b16 %v660, %v659
    %v683 = vpack.c.b16 %v662, %v661
    %v684 = vpack.c.b16 %v664, %v663
    %v685 = vpack.c.b16 %v666, %v665
    %v686 = vpack.c.b16 %v668, %v667
    %v687 = vpack.c.b16 %v670, %v669
    %v688 = vpack.c.b16 %v672, %v671
    %705 = vmatprep.subr.bf16.mxu0 0
    %706 = vmatpush1.bf16.msra.mxu0 %v673
    %707 = vmatprep.subr.bf16.mxu0 0
    %708 = vmatpush1.bf16.msra.mxu0 %v674
    %709 = vmatprep.subr.bf16.mxu0 0
    %710 = vmatpush1.bf16.msra.mxu0 %v675
    %711 = vmatprep.subr.bf16.mxu0 0
    %712 = vmatpush1.bf16.msra.mxu0 %v676
    %713 = vmatprep.subr.bf16.mxu0 0
    %714 = vmatpush1.bf16.msra.mxu0 %v677
    %715 = vmatprep.subr.bf16.mxu0 0
    %716 = vmatpush1.bf16.msra.mxu0 %v678
    %717 = vmatprep.subr.bf16.mxu0 0
    %718 = vmatpush1.bf16.msra.mxu0 %v679
    %719 = vmatprep.subr.bf16.mxu0 0
    %720 = vmatpush1.bf16.msra.mxu0 %v680
    %721 = vmatprep.subr.bf16.mxu0 0
    %722 = vmatpush1.bf16.msra.mxu0 %v681
    %723 = vmatprep.subr.bf16.mxu0 0
    %724 = vmatpush1.bf16.msra.mxu0 %v682
    %725 = vmatprep.subr.bf16.mxu0 0
    %726 = vmatpush1.bf16.msra.mxu0 %v683
    %727 = vmatprep.subr.bf16.mxu0 0
    %728 = vmatpush1.bf16.msra.mxu0 %v684
    %729 = vmatprep.subr.bf16.mxu0 0
    %730 = vmatpush1.bf16.msra.mxu0 %v685
    %731 = vmatprep.subr.bf16.mxu0 0
    %732 = vmatpush1.bf16.msra.mxu0 %v686
    %733 = vmatprep.subr.bf16.mxu0 0
    %734 = vmatpush1.bf16.msra.mxu0 %v687
    %735 = vmatprep.subr.bf16.mxu0 0
    %736 = vmatpush1.bf16.msra.mxu0 %v688
    %737 = vmatprep.mubr.bf16.mxu0 %v569
    %738 = vmatmul.mubr.bf16.gmra.mrb[0].mxu0 %v568
    %v739 = vpop.f32.mrb[0].mxu0
    %v740 = vadd.f32 %v607, %v739
    %v741 = vpop.f32.mrb[0].mxu0
    %v742 = vpop.f32.mrb[0].mxu0
    %v743 = vpop.f32.mrb[0].mxu0
    %744 = vdwg.mxu0
    %v745 = vmax.f32 %v740, 0.0
    %v746 = vpack.c.bf16 %v745, %v745
    %v747 = vld [vmem:[#allocation7] sm:$0xf]
    %v748 = vld [vmem:[#allocation7 + $0x4] sm:$0xf]
    %v749 = vld [vmem:[#allocation7 + $0x8] sm:$0xf]
    %v750 = vld [vmem:[#allocation7 + $0xc] sm:$0xf]
    %v751 = vld [vmem:[#allocation7 + $0x10] sm:$0xf]
    %v752 = vld [vmem:[#allocation7 + $0x14] sm:$0xf]
    %v753 = vld [vmem:[#allocation7 + $0x18] sm:$0xf]
    %v754 = vld [vmem:[#allocation7 + $0x1c] sm:$0xf]
    %v755 = vld [vmem:[#allocation7 + $0x20] sm:$0xf]
    %v756 = vld [vmem:[#allocation7 + $0x24] sm:$0xf]
    %v757 = vld [vmem:[#allocation7 + $0x28] sm:$0xf]
    %v758 = vld [vmem:[#allocation7 + $0x2c] sm:$0xf]
    %v759 = vld [vmem:[#allocation7 + $0x30] sm:$0xf]
    %v760 = vld [vmem:[#allocation7 + $0x34] sm:$0xf]
    %v761 = vld [vmem:[#allocation7 + $0x38] sm:$0xf]
    %v762 = vld [vmem:[#allocation7 + $0x3c] sm:$0xf]
    %v779 = vunpack.c.l.b16 %v747
    %v780 = vunpack.c.l.b16 %v748
    %v781 = vunpack.c.l.b16 %v749
    %v782 = vunpack.c.l.b16 %v750
    %v783 = vunpack.c.l.b16 %v751
    %v784 = vunpack.c.l.b16 %v752
    %v785 = vunpack.c.l.b16 %v753
    %v786 = vunpack.c.l.b16 %v754
    %v787 = vunpack.c.l.b16 %v755
    %v788 = vunpack.c.l.b16 %v756
    %v789 = vunpack.c.l.b16 %v757
    %v790 = vunpack.c.l.b16 %v758
    %v791 = vunpack.c.l.b16 %v759
    %v792 = vunpack.c.l.b16 %v760
    %v793 = vunpack.c.l.b16 %v761
    %v794 = vunpack.c.l.b16 %v762
    %v795 = vpack.c.b16 %v780, %v779
    %v796 = vpack.c.b16 %v782, %v781
    %v797 = vpack.c.b16 %v784, %v783
    %v798 = vpack.c.b16 %v786, %v785
    %v799 = vpack.c.b16 %v788, %v787
    %v800 = vpack.c.b16 %v790, %v789
    %v801 = vpack.c.b16 %v792, %v791
    %v802 = vpack.c.b16 %v794, %v793
    %811 = vmatprep.subr.bf16.mxu0 0
    %812 = vmatpush1.bf16.msra.mxu0 %v795
    %813 = vmatprep.subr.bf16.mxu0 0
    %814 = vmatpush1.bf16.msra.mxu0 %v796
    %815 = vmatprep.subr.bf16.mxu0 0
    %816 = vmatpush1.bf16.msra.mxu0 %v797
    %817 = vmatprep.subr.bf16.mxu0 0
    %818 = vmatpush1.bf16.msra.mxu0 %v798
    %819 = vmatprep.subr.bf16.mxu0 0
    %820 = vmatpush1.bf16.msra.mxu0 %v799
    %821 = vmatprep.subr.bf16.mxu0 0
    %822 = vmatpush1.bf16.msra.mxu0 %v800
    %823 = vmatprep.subr.bf16.mxu0 0
    %824 = vmatpush1.bf16.msra.mxu0 %v801
    %825 = vmatprep.subr.bf16.mxu0 0
    %826 = vmatpush1.bf16.msra.mxu0 %v802
    %827 = vmatprep.subr.bf16.mxu0 0
    %828 = vmatpush1.bf16.msra.mxu0 0
    %829 = vmatprep.subr.bf16.mxu0 0
    %830 = vmatpush1.bf16.msra.mxu0 0
    %831 = vmatprep.subr.bf16.mxu0 0
    %832 = vmatpush1.bf16.msra.mxu0 0
    %833 = vmatprep.subr.bf16.mxu0 0
    %834 = vmatpush1.bf16.msra.mxu0 0
    %835 = vmatprep.subr.bf16.mxu0 0
    %836 = vmatpush1.bf16.msra.mxu0 0
    %837 = vmatprep.subr.bf16.mxu0 0
    %838 = vmatpush1.bf16.msra.mxu0 0
    %839 = vmatprep.subr.bf16.mxu0 0
    %840 = vmatpush1.bf16.msra.mxu0 0
    %841 = vmatprep.subr.bf16.mxu0 0
    %842 = vmatpush1.bf16.msra.mxu0 0
    %843 = vmatprep.mubr.bf16.mxu0 0
    %844 = vmatmul.mubr.bf16.gmra.mrb[0].mxu0 %v746
    %v845 = vpop.f32.mrb[0].mxu0
    %v846 = vadd.f32 0.0, %v845
    %v847 = vpop.f32.mrb[0].mxu0
    %v848 = vpop.f32.mrb[0].mxu0
    %v849 = vpop.f32.mrb[0].mxu0
    %850 = vdwg.mxu0
    %v851 = vld [vmem:[%s6] sm:$0x1]
    %v853 = vlaneseq
    %v854 = vshrl.u32 %v853, 7
    %v855 = vsub.s32 0, %v854
    %v856 = vrot.slane %v851, %v855
    %v858 = vadd.f32 %v846, %v856
    %vm859 = vcmask 15360
    %860 = vst.msk [vmem:[%s7] sm:$0xff] %vm859, %v858
    // Predicated region
    $region46: #{tpu_custom_call.1} parent=1 // pred_check
      _
    $region47: #{tpu_custom_call.1} parent=1 // pred_check_branch
      %862 = sbr.rel (0) target = $region49
    $region48: #{tpu_custom_call.1} parent=1 // pred_region
      _
    $region49: #{tpu_custom_call.1} parent=1 // pred_fallthru
      _
    // Predicated region
    $region50: #{tpu_custom_call.1} parent=1 // pred_check
      _
    $region51: #{tpu_custom_call.1} parent=1 // pred_check_branch
      %864 = sbr.rel (0) target = $region53
    $region52: #{tpu_custom_call.1} parent=1 // pred_region
      _
    $region53: #{tpu_custom_call.1} parent=1 // pred_fallthru
      _
    %865 = vsyncpa [#allocation3], 1
    %866 = vsyncpa [#allocation5], 1
    %867 = vsyncpa [#allocation8], 1

</llo_original>
